<compile_context>
chip_gen: v5e
topology: v5e:2x2
jax: 0.10.0
libtpu: 0.0.40
codegen_flags: <defaults>
</compile_context>

<pallas_src>
import math
import functools

import jax
import jax.numpy as jnp
from jax import lax
from jax.experimental import pallas as pl
from jax.experimental.pallas import tpu as pltpu

# Finite "-inf" for masked logits: avoids (-inf) - (-inf) NaN hazards while
# still underflowing to exactly 0 after exp().
MASK_VALUE = -1e30


# ---------------------------------------------------------------------------
# Stage 1: fused Q/K/V projection  q = x@(Wq*scale), k = x@Wk, v = x@Wv
# ---------------------------------------------------------------------------
def _qkv_proj_kernel(x_ref, wq_ref, wk_ref, wv_ref, q_ref, k_ref, v_ref):
    # Cast activations to the MXU compute dtype (bf16) in-kernel; the weights
    # are already bf16 from prepare_head_params.  All matmuls accumulate f32.
    x = x_ref[...].astype(wq_ref.dtype)                       # (tm, C)
    q_ref[...] = jnp.dot(x, wq_ref[...],
                         preferred_element_type=jnp.float32).astype(q_ref.dtype)
    k_ref[...] = jnp.dot(x, wk_ref[...],
                         preferred_element_type=jnp.float32).astype(k_ref.dtype)
    v_ref[...] = jnp.dot(x, wv_ref[...],
                         preferred_element_type=jnp.float32).astype(v_ref.dtype)


# ---------------------------------------------------------------------------
# Stage 2: flash-style causal attention with online softmax in VMEM scratch
# ---------------------------------------------------------------------------
def _flash_attn_kernel(q_ref, k_ref, v_ref, o_ref, m_sc, l_sc, acc_sc, *, tq, tk):
    qi = pl.program_id(1)
    ki = pl.program_id(2)
    nk = pl.num_programs(2)

    q_start = qi * tq
    k_start = ki * tk
    q_last = q_start + (tq - 1)
    k_last = k_start + (tk - 1)

    @pl.when(ki == 0)
    def _init():
        m_sc[...] = jnp.full_like(m_sc, -jnp.inf)
        l_sc[...] = jnp.zeros_like(l_sc)
        acc_sc[...] = jnp.zeros_like(acc_sc)

    # Causal tile classification.  Fully-masked (above-diagonal) tiles are
    # skipped entirely; their K/V DMA is already elided by the clamped
    # index_map in the wrapper.
    visible = k_start <= q_last          # at least one unmasked element
    needs_mask = k_last > q_start        # tile straddles the causal diagonal

    def _step(apply_mask):
        q = q_ref[...]                                        # (tq, hs) bf16
        k = k_ref[...]                                        # (tk, hs) bf16
        # q @ k^T without an explicit transpose (contract the head dims).
        s = lax.dot_general(q, k, (((1,), (1,)), ((), ())),
                            preferred_element_type=jnp.float32)   # (tq, tk) f32
        if apply_mask:                    # only the diagonal tile pays for this
            row = q_start + lax.broadcasted_iota(jnp.int32, s.shape, 0)
            col = k_start + lax.broadcasted_iota(jnp.int32, s.shape, 1)
            s = jnp.where(col <= row, s, MASK_VALUE)
        # Online (running) softmax, all statistics in f32.
        m_prev = m_sc[...]                                    # (tq, 1)
        m_new = jnp.maximum(m_prev, jnp.max(s, axis=-1, keepdims=True))
        alpha = jnp.exp(m_prev - m_new)
        p = jnp.exp(s - m_new)                                # (tq, tk) f32
        l_sc[...] = alpha * l_sc[...] + jnp.sum(p, axis=-1, keepdims=True)
        acc_sc[...] = alpha * acc_sc[...] + jnp.dot(
            p.astype(v_ref.dtype), v_ref[...],
            preferred_element_type=jnp.float32)               # (tq, hs) f32
        m_sc[...] = m_new

    # Two pl.when branches so the iota/compare/select mask work only exists on
    # the diagonal tile; below-diagonal tiles run the unmasked path.
    @pl.when(jnp.logical_and(visible, needs_mask))
    def _diag_tile():
        _step(apply_mask=True)

    @pl.when(jnp.logical_and(visible, jnp.logical_not(needs_mask)))
    def _full_tile():
        _step(apply_mask=False)

    @pl.when(ki == nk - 1)
    def _finalize():
        inv_l = pl.reciprocal(l_sc[...], approx=True)         # EUP slot, ~free
        o_ref[...] = (acc_sc[...] * inv_l).astype(o_ref.dtype)


# ---------------------------------------------------------------------------
# Host-side wrappers
# ---------------------------------------------------------------------------
def prepare_head_params(w_q, w_k, w_v, *, head_size, compute_dtype=jnp.bfloat16):
    """One-time host-side prep of the constant weights:
       - fold the head_size**-0.5 score scale into W_q (in f32),
       - cast to the MXU compute dtype (bf16) for 2-4x matmul throughput.
    Weights are the already-transposed nn.Linear weights, shape (C, head_size)."""
    scale = head_size ** (-0.5)
    return ((w_q.astype(jnp.float32) * scale).astype(compute_dtype),
            w_k.astype(compute_dtype),
            w_v.astype(compute_dtype))


def head_attention(x, params, *, head_size, q_tile=128, kv_tile=128,
                   compute_dtype=jnp.bfloat16):
    """x: (B, T, C); params: (w_q_scaled, w_k, w_v) from prepare_head_params.
    Returns (B, T, head_size) in x.dtype — Head.forward in eval mode."""
    B, T, C = x.shape
    w_q, w_k, w_v = params
    hs = head_size

    tq = min(q_tile, T)
    tk = min(kv_tile, T)
    assert T % tq == 0 and T % tk == 0, "T must divide the tile sizes"
    assert tq % 8 == 0 and tk % 8 == 0, "tiles must be sublane (8) aligned"
    nq, nk = T // tq, T // tk

    # --- Stage 1: Q/K/V projections, computed exactly once per token --------
    q, k, v = pl.pallas_call(
        _qkv_proj_kernel,
        out_shape=(jax.ShapeDtypeStruct((B, T, hs), compute_dtype),) * 3,
        grid_spec=pltpu.PrefetchScalarGridSpec(
            num_scalar_prefetch=0,
            grid=(B, nq),
            in_specs=[
                pl.BlockSpec((pl.Squeezed(), tq, C), lambda b, m: (b, m, 0)),
                # Constant index_map -> weights are fetched once, not per step.
                pl.BlockSpec((C, hs), lambda b, m: (0, 0)),
                pl.BlockSpec((C, hs), lambda b, m: (0, 0)),
                pl.BlockSpec((C, hs), lambda b, m: (0, 0)),
            ],
            out_specs=[
                pl.BlockSpec((pl.Squeezed(), tq, hs), lambda b, m: (b, m, 0)),
            ] * 3,
        ),
        compiler_params=pltpu.CompilerParams(
            dimension_semantics=("parallel", "parallel")),
    )(x, w_q, w_k, w_v)

    # --- Stage 2: flash attention over (B, q_tiles, kv_tiles) ---------------
    kernel = functools.partial(_flash_attn_kernel, tq=tq, tk=tk)

    def q_map(b, qi, ki):
        return (b, qi, 0)

    def kv_map(b, qi, ki):
        # Clamp above-diagonal kv tiles back to the diagonal tile: those grid
        # steps are skipped in the kernel, and an unchanged block index means
        # the pipeline issues no fresh DMA for them.
        return (b, jnp.minimum(ki, (qi * tq + tq - 1) // tk), 0)

    out = pl.pallas_call(
        kernel,
        out_shape=jax.ShapeDtypeStruct((B, T, hs), x.dtype),
        grid_spec=pltpu.PrefetchScalarGridSpec(
            num_scalar_prefetch=0,
            grid=(B, nq, nk),
            in_specs=[
                pl.BlockSpec((pl.Squeezed(), tq, hs), q_map),
                pl.BlockSpec((pl.Squeezed(), tk, hs), kv_map),
                pl.BlockSpec((pl.Squeezed(), tk, hs), kv_map),
            ],
            out_specs=pl.BlockSpec((pl.Squeezed(), tq, hs), q_map),
            scratch_shapes=[
                pltpu.VMEM((tq, 1), jnp.float32),    # running max  m
                pltpu.VMEM((tq, 1), jnp.float32),    # running sum  l
                pltpu.VMEM((tq, hs), jnp.float32),   # PV accumulator
            ],
        ),
        compiler_params=pltpu.CompilerParams(
            dimension_semantics=("parallel", "parallel", "arbitrary"),
            # Explicit scoped-VMEM budget; raise toward the chip limit for
            # long-T runs (v7x has only 64 MiB physical VMEM).
            vmem_limit_bytes=32 * 1024 * 1024,
        ),
    )(q, k, v)
    return out


def _reference(x, w_q, w_k, w_v):
    """Plain-JAX f32 reference matching the PyTorch Head.forward (eval mode)."""
    B, T, C = x.shape
    q = x @ w_q
    k = x @ w_k
    v = x @ w_v
    wei = (q @ jnp.swapaxes(k, -1, -2)) * (k.shape[-1] ** (-0.5))
    mask = jnp.tril(jnp.ones((T, T), dtype=bool))
    wei = jnp.where(mask, wei, -jnp.inf)
    wei = jax.nn.softmax(wei, axis=-1)
    return wei @ v


if __name__ == "__main__":
    # Small, module-consistent demo shapes (n_embd 384 -> 64, head_size -> 16,
    # T = 32 <= block_size = 256, batch = 2).  Tiles of 16 give a (2, 2, 2)
    # grid so every kernel path is exercised: diagonal (masked) tile,
    # below-diagonal (unmasked) tile, above-diagonal (skipped) tile, and the
    # multi-step online-softmax rescale.
    N_EMBD, HEAD_SIZE, BATCH, SEQ = 64, 16, 2, 32

    key = jax.random.PRNGKey(0)
    kx, kq, kk, kv = jax.random.split(key, 4)
    x = jax.random.normal(kx, (BATCH, SEQ, N_EMBD), dtype=jnp.float32)

    # nn.Linear(n_embd, head_size, bias=False): y = x @ W.T -> store W^T (C, hs).
    bound = 1.0 / math.sqrt(N_EMBD)
    w_q = jax.random.uniform(kq, (N_EMBD, HEAD_SIZE), minval=-bound, maxval=bound,
                             dtype=jnp.float32)
    w_k = jax.random.uniform(kk, (N_EMBD, HEAD_SIZE), minval=-bound, maxval=bound,
                             dtype=jnp.float32)
    w_v = jax.random.uniform(kv, (N_EMBD, HEAD_SIZE), minval=-bound, maxval=bound,
                             dtype=jnp.float32)

    params = prepare_head_params(w_q, w_k, w_v, head_size=HEAD_SIZE)

    out = head_attention(x, params, head_size=HEAD_SIZE, q_tile=16, kv_tile=16)
    out = jax.block_until_ready(out)

    ref = _reference(x, w_q, w_k, w_v)
    assert out.shape == (BATCH, SEQ, HEAD_SIZE), out.shape
    # Tolerance covers bf16 MXU operands (f32 accumulation) and the EUP
    # approximate-reciprocal softmax denominator.
    max_err = float(jnp.max(jnp.abs(out - ref)))
    assert jnp.allclose(out, ref, atol=3e-2, rtol=3e-2), max_err
    print("KERNEL_OK")
</pallas_src>

<mosaic_0001>
module attributes {stable_mosaic.version = 11 : i64} {
  func.func @_qkv_proj_kernel(%arg0: i32, %arg1: i32, %arg2: memref<1x16x64xf32, #tpu.memory_space<vmem>>, %arg3: memref<64x16xbf16, #tpu.memory_space<vmem>>, %arg4: memref<64x16xbf16, #tpu.memory_space<vmem>>, %arg5: memref<64x16xbf16, #tpu.memory_space<vmem>>, %arg6: memref<1x16x16xbf16, #tpu.memory_space<vmem>>, %arg7: memref<1x16x16xbf16, #tpu.memory_space<vmem>>, %arg8: memref<1x16x16xbf16, #tpu.memory_space<vmem>>) attributes {dimension_semantics = [#tpu.dimension_semantics<parallel>, #tpu.dimension_semantics<parallel>], iteration_bounds = array<i64: 2, 2>, scalar_prefetch = 0 : i64, scratch_operands = 0 : i64, tpu.core_type = #tpu.core_type<tc>, window_params = [{transform_indices = @transform_0, window_bounds = array<i64: 1, 16, 64>}, {pipeline_mode = #tpu.pipeline_mode<synchronous>, transform_indices = @transform_1, window_bounds = array<i64: 64, 16>}, {pipeline_mode = #tpu.pipeline_mode<synchronous>, transform_indices = @transform_2, window_bounds = array<i64: 64, 16>}, {pipeline_mode = #tpu.pipeline_mode<synchronous>, transform_indices = @transform_3, window_bounds = array<i64: 64, 16>}, {transform_indices = @transform_4, window_bounds = array<i64: 1, 16, 16>}, {transform_indices = @transform_5, window_bounds = array<i64: 1, 16, 16>}, {transform_indices = @transform_6, window_bounds = array<i64: 1, 16, 16>}]} {
    %c0 = arith.constant 0 : index
    %c0_0 = arith.constant 0 : index
    %c0_1 = arith.constant 0 : index
    %0 = vector.load %arg2[%c0, %c0_0, %c0_1] : memref<1x16x64xf32, #tpu.memory_space<vmem>>, vector<1x16x64xf32>
    %1 = vector.shape_cast %0 : vector<1x16x64xf32> to vector<16x64xf32>
    %2 = arith.truncf %1 : vector<16x64xf32> to vector<16x64xbf16>
    %c0_2 = arith.constant 0 : index
    %c0_3 = arith.constant 0 : index
    %3 = vector.load %arg3[%c0_2, %c0_3] : memref<64x16xbf16, #tpu.memory_space<vmem>>, vector<64x16xbf16>
    %cst = arith.constant dense<0.000000e+00> : vector<16x16xf32>
    %4 = tpu.matmul %2, %3, %cst {dimension_numbers = #tpu.dot_dimension_numbers<[1], [0], [0], [1], [0, 0, 1, 1], [], []>} : vector<16x64xbf16>, vector<64x16xbf16>, vector<16x16xf32> -> vector<16x16xf32>
    %5 = arith.truncf %4 : vector<16x16xf32> to vector<16x16xbf16>
    %c0_4 = arith.constant 0 : index
    %c0_5 = arith.constant 0 : index
    %c0_6 = arith.constant 0 : index
    %6 = vector.load %arg6[%c0_4, %c0_5, %c0_6] : memref<1x16x16xbf16, #tpu.memory_space<vmem>>, vector<1x16x16xbf16>
    %7 = vector.shape_cast %6 : vector<1x16x16xbf16> to vector<16x16xbf16>
    %8 = vector.shape_cast %5 : vector<16x16xbf16> to vector<1x16x16xbf16>
    tpu.vector_store %arg6[%c0_4, %c0_5, %c0_6], %8 {strides = array<i32>} : memref<1x16x16xbf16, #tpu.memory_space<vmem>>, vector<1x16x16xbf16>,
    %c0_7 = arith.constant 0 : index
    %c0_8 = arith.constant 0 : index
    %9 = vector.load %arg4[%c0_7, %c0_8] : memref<64x16xbf16, #tpu.memory_space<vmem>>, vector<64x16xbf16>
    %cst_9 = arith.constant dense<0.000000e+00> : vector<16x16xf32>
    %10 = tpu.matmul %2, %9, %cst_9 {dimension_numbers = #tpu.dot_dimension_numbers<[1], [0], [0], [1], [0, 0, 1, 1], [], []>} : vector<16x64xbf16>, vector<64x16xbf16>, vector<16x16xf32> -> vector<16x16xf32>
    %11 = arith.truncf %10 : vector<16x16xf32> to vector<16x16xbf16>
    %c0_10 = arith.constant 0 : index
    %c0_11 = arith.constant 0 : index
    %c0_12 = arith.constant 0 : index
    %12 = vector.load %arg7[%c0_10, %c0_11, %c0_12] : memref<1x16x16xbf16, #tpu.memory_space<vmem>>, vector<1x16x16xbf16>
    %13 = vector.shape_cast %12 : vector<1x16x16xbf16> to vector<16x16xbf16>
    %14 = vector.shape_cast %11 : vector<16x16xbf16> to vector<1x16x16xbf16>
    tpu.vector_store %arg7[%c0_10, %c0_11, %c0_12], %14 {strides = array<i32>} : memref<1x16x16xbf16, #tpu.memory_space<vmem>>, vector<1x16x16xbf16>,
    %c0_13 = arith.constant 0 : index
    %c0_14 = arith.constant 0 : index
    %15 = vector.load %arg5[%c0_13, %c0_14] : memref<64x16xbf16, #tpu.memory_space<vmem>>, vector<64x16xbf16>
    %cst_15 = arith.constant dense<0.000000e+00> : vector<16x16xf32>
    %16 = tpu.matmul %2, %15, %cst_15 {dimension_numbers = #tpu.dot_dimension_numbers<[1], [0], [0], [1], [0, 0, 1, 1], [], []>} : vector<16x64xbf16>, vector<64x16xbf16>, vector<16x16xf32> -> vector<16x16xf32>
    %17 = arith.truncf %16 : vector<16x16xf32> to vector<16x16xbf16>
    %c0_16 = arith.constant 0 : index
    %c0_17 = arith.constant 0 : index
    %c0_18 = arith.constant 0 : index
    %18 = vector.load %arg8[%c0_16, %c0_17, %c0_18] : memref<1x16x16xbf16, #tpu.memory_space<vmem>>, vector<1x16x16xbf16>
    %19 = vector.shape_cast %18 : vector<1x16x16xbf16> to vector<16x16xbf16>
    %20 = vector.shape_cast %17 : vector<16x16xbf16> to vector<1x16x16xbf16>
    tpu.vector_store %arg8[%c0_16, %c0_17, %c0_18], %20 {strides = array<i32>} : memref<1x16x16xbf16, #tpu.memory_space<vmem>>, vector<1x16x16xbf16>,
    return
  }
  func.func @transform_0(%arg0: i32, %arg1: i32) -> (i32, i32, i32) {
    %c0_i32 = arith.constant 0 : i32
    %c0_i32_0 = arith.constant 0 : i32
    return %arg0, %arg1, %c0_i32 : i32, i32, i32
  }
  func.func @transform_1(%arg0: i32, %arg1: i32) -> (i32, i32) {
    %c0_i32 = arith.constant 0 : i32
    %c0_i32_0 = arith.constant 0 : i32
    %c0_i32_1 = arith.constant 0 : i32
    return %c0_i32, %c0_i32_0 : i32, i32
  }
  func.func @transform_2(%arg0: i32, %arg1: i32) -> (i32, i32) {
    %c0_i32 = arith.constant 0 : i32
    %c0_i32_0 = arith.constant 0 : i32
    %c0_i32_1 = arith.constant 0 : i32
    return %c0_i32, %c0_i32_0 : i32, i32
  }
  func.func @transform_3(%arg0: i32, %arg1: i32) -> (i32, i32) {
    %c0_i32 = arith.constant 0 : i32
    %c0_i32_0 = arith.constant 0 : i32
    %c0_i32_1 = arith.constant 0 : i32
    return %c0_i32, %c0_i32_0 : i32, i32
  }
  func.func @transform_4(%arg0: i32, %arg1: i32) -> (i32, i32, i32) {
    %c0_i32 = arith.constant 0 : i32
    %c0_i32_0 = arith.constant 0 : i32
    return %arg0, %arg1, %c0_i32 : i32, i32, i32
  }
  func.func @transform_5(%arg0: i32, %arg1: i32) -> (i32, i32, i32) {
    %c0_i32 = arith.constant 0 : i32
    %c0_i32_0 = arith.constant 0 : i32
    return %arg0, %arg1, %c0_i32 : i32, i32, i32
  }
  func.func @transform_6(%arg0: i32, %arg1: i32) -> (i32, i32, i32) {
    %c0_i32 = arith.constant 0 : i32
    %c0_i32_0 = arith.constant 0 : i32
    return %arg0, %arg1, %c0_i32 : i32, i32, i32
  }
}

</mosaic_0001>

<llo_original>
// kernel: tpu_custom_call.1
$region0: #{tpu_custom_call.1}
  #allocation0 [shape = 'u32[]', space=smem, size = 0x4, offset = 0x4, fixed_abs, tag = 'smem constant byte address 0x4 - core index']
  #allocation1 [shape = 'u32[72,128]{1,0:T(1,128)}', space=vmem, size = 0x9000, scoped, tag = 'internal scratch']
  %s0 = inlined_call_operand.vmem [shape: f32[2,32,64], index: 0, kind: input, shape index: {}]
  %s1 = inlined_call_operand.vmem [shape: bf16[64,16], index: 1, kind: input, shape index: {}]
  %s2 = inlined_call_operand.vmem [shape: bf16[64,16], index: 2, kind: input, shape index: {}]
  %s3 = inlined_call_operand.vmem [shape: bf16[64,16], index: 3, kind: input, shape index: {}]
  %s4 = inlined_call_operand.vmem [shape: bf16[2,32,16], index: 4, kind: output, shape index: {0}]
  %s5 = inlined_call_operand.vmem [shape: bf16[2,32,16], index: 5, kind: output, shape index: {1}]
  %s6 = inlined_call_operand.vmem [shape: bf16[2,32,16], index: 6, kind: output, shape index: {2}]
  %7 = xla_tuple %s4, %s5, %s6
  %s8 = sld [smem:[#allocation0]]
  $region65: #{tpu_custom_call.1} parent=0
    _
  %s10 = ssub.s32 1, %s8
  %s11 = scalar_select 0, %s10, %s8
  loop: start=0, step=1, limit=6
  $region2: #{tpu_custom_call.1} parent=0 // loop_pre_header
    _
  $region3: #{tpu_custom_call.1} parent=0 // loop_header
    %s13 = sphi 0, %s17
    %p14 = scmp.ge.s32.totalorder %s13, 6
    %s20 = sphi 0, %s32
    %s21 = sphi 0, %s28
    %s22 = sphi 0, %s20
    %s23 = sphi 0, %s21
    %s24 = sphi 0, %s22
    %s25 = sphi 0, %s23
    %s37 = sphi 0, %s39
    %s40 = sphi 0, %s37
    %s41 = sphi 0, %s40
    %s57 = sphi 0, %s41
    %s61 = sphi 0, %s61
    %s63 = sphi 0, %s61
    %s64 = sphi 0, %s63
    %s78 = sphi 0, %s64
    %s82 = sphi 0, %s82
    %s84 = sphi 0, %s82
    %s85 = sphi 0, %s84
    %s99 = sphi 0, %s85
    %s103 = sphi 0, %s103
    %s105 = sphi 0, %s103
    %s106 = sphi 0, %s105
    %s120 = sphi 0, %s106
    %s128 = sphi 0, %s130
    %s131 = sphi 0, %s128
    %s132 = sphi 0, %s131
    %s148 = sphi 0, %s132
    %s156 = sphi 0, %s158
    %s159 = sphi 0, %s156
    %s160 = sphi 0, %s159
    %s176 = sphi 0, %s160
    %s184 = sphi 0, %s186
    %s187 = sphi 0, %s184
    %s188 = sphi 0, %s187
    %s204 = sphi 0, %s188
  $region4: #{tpu_custom_call.1} parent=0 // loop_header_branch
    %16 = sbr.rel (%p14) target = $region8
  $region5: #{tpu_custom_call.1} parent=0 // loop_body
    %s18 = ssub.s32 %s13, 1
    %s19 = ssub.s32 %s13, 2
    %s26 = sadd.s32 1, %s21
    %p27 = scmp.ge.s32.totalorder %s26, 2
    %s28 = scalar_select %p27, 0, %s26
    %s29 = sadd.s32 1, %s20
    %s30 = scalar_select %p27, %s29, %s20
    %p31 = scmp.ge.s32.totalorder %s30, 2
    %s32 = scalar_select %p31, 0, %s30
    %s33 = ssub.s32 %s20, %s32
    %s34 = ssub.s32 %s21, %s28
    %s35 = sor.u32 %s33, %s34
    %p36 = scmp.eq.s32.totalorder %s35, 0
    %s38 = sadd.s32 %s37, 1
    %s39 = scalar_select %p36, %s37, %s38
    %p42 = pneg %p36
    %p43 = scmp.eq.s32.totalorder %s13, 3
    %p44 = por %p42, %p43
    %p45 = scmp.ne.s32.totalorder %s37, %s40
    %p46 = scmp.eq.s32.totalorder %s13, 0
    %p47 = por %p45, %p46
    %p48 = scmp.ne.s32.totalorder %s37, %s40
    %p49 = scmp.eq.s32.totalorder %s18, 3
    %p50 = por %p48, %p49
    %p51 = scmp.ne.s32.totalorder %s40, %s41
    %p52 = scmp.eq.s32.totalorder %s18, 0
    %p53 = por %p51, %p52
    %p54 = scmp.ne.s32.totalorder %s40, %s41
    %p55 = scmp.eq.s32.totalorder %s19, 3
    %p56 = por %p54, %p55
    %p58 = scmp.ne.s32.totalorder %s41, %s57
    %p59 = scmp.eq.s32.totalorder %s19, 0
    %p60 = por %p58, %p59
    %s62 = sadd.s32 %s61, 1
    %p65 = scmp.eq.s32.totalorder %s13, 3
    %p66 = scmp.ne.s32.totalorder %s61, %s63
    %p67 = scmp.eq.s32.totalorder %s13, 0
    %p68 = por %p66, %p67
    %p69 = scmp.ne.s32.totalorder %s61, %s63
    %p70 = scmp.eq.s32.totalorder %s18, 3
    %p71 = por %p69, %p70
    %p72 = scmp.ne.s32.totalorder %s63, %s64
    %p73 = scmp.eq.s32.totalorder %s18, 0
    %p74 = por %p72, %p73
    %p75 = scmp.ne.s32.totalorder %s63, %s64
    %p76 = scmp.eq.s32.totalorder %s19, 3
    %p77 = por %p75, %p76
    %p79 = scmp.ne.s32.totalorder %s64, %s78
    %p80 = scmp.eq.s32.totalorder %s19, 0
    %p81 = por %p79, %p80
    %s83 = sadd.s32 %s82, 1
    %p86 = scmp.eq.s32.totalorder %s13, 3
    %p87 = scmp.ne.s32.totalorder %s82, %s84
    %p88 = scmp.eq.s32.totalorder %s13, 0
    %p89 = por %p87, %p88
    %p90 = scmp.ne.s32.totalorder %s82, %s84
    %p91 = scmp.eq.s32.totalorder %s18, 3
    %p92 = por %p90, %p91
    %p93 = scmp.ne.s32.totalorder %s84, %s85
    %p94 = scmp.eq.s32.totalorder %s18, 0
    %p95 = por %p93, %p94
    %p96 = scmp.ne.s32.totalorder %s84, %s85
    %p97 = scmp.eq.s32.totalorder %s19, 3
    %p98 = por %p96, %p97
    %p100 = scmp.ne.s32.totalorder %s85, %s99
    %p101 = scmp.eq.s32.totalorder %s19, 0
    %p102 = por %p100, %p101
    %s104 = sadd.s32 %s103, 1
    %p107 = scmp.eq.s32.totalorder %s13, 3
    %p108 = scmp.ne.s32.totalorder %s103, %s105
    %p109 = scmp.eq.s32.totalorder %s13, 0
    %p110 = por %p108, %p109
    %p111 = scmp.ne.s32.totalorder %s103, %s105
    %p112 = scmp.eq.s32.totalorder %s18, 3
    %p113 = por %p111, %p112
    %p114 = scmp.ne.s32.totalorder %s105, %s106
    %p115 = scmp.eq.s32.totalorder %s18, 0
    %p116 = por %p114, %p115
    %p117 = scmp.ne.s32.totalorder %s105, %s106
    %p118 = scmp.eq.s32.totalorder %s19, 3
    %p119 = por %p117, %p118
    %p121 = scmp.ne.s32.totalorder %s106, %s120
    %p122 = scmp.eq.s32.totalorder %s19, 0
    %p123 = por %p121, %p122
    %s124 = ssub.s32 %s20, %s32
    %s125 = ssub.s32 %s21, %s28
    %s126 = sor.u32 %s124, %s125
    %p127 = scmp.eq.s32.totalorder %s126, 0
    %s129 = sadd.s32 %s128, 1
    %s130 = scalar_select %p127, %s128, %s129
    %p133 = pneg %p127
    %p134 = scmp.eq.s32.totalorder %s13, 3
    %p135 = por %p133, %p134
    %p136 = scmp.ne.s32.totalorder %s128, %s131
    %p137 = scmp.eq.s32.totalorder %s13, 0
    %p138 = por %p136, %p137
    %p139 = scmp.ne.s32.totalorder %s128, %s131
    %p140 = scmp.eq.s32.totalorder %s18, 3
    %p141 = por %p139, %p140
    %p142 = scmp.ne.s32.totalorder %s131, %s132
    %p143 = scmp.eq.s32.totalorder %s18, 0
    %p144 = por %p142, %p143
    %p145 = scmp.ne.s32.totalorder %s131, %s132
    %p146 = scmp.eq.s32.totalorder %s19, 3
    %p147 = por %p145, %p146
    %p149 = scmp.ne.s32.totalorder %s132, %s148
    %p150 = scmp.eq.s32.totalorder %s19, 0
    %p151 = por %p149, %p150
    %s152 = ssub.s32 %s20, %s32
    %s153 = ssub.s32 %s21, %s28
    %s154 = sor.u32 %s152, %s153
    %p155 = scmp.eq.s32.totalorder %s154, 0
    %s157 = sadd.s32 %s156, 1
    %s158 = scalar_select %p155, %s156, %s157
    %p161 = pneg %p155
    %p162 = scmp.eq.s32.totalorder %s13, 3
    %p163 = por %p161, %p162
    %p164 = scmp.ne.s32.totalorder %s156, %s159
    %p165 = scmp.eq.s32.totalorder %s13, 0
    %p166 = por %p164, %p165
    %p167 = scmp.ne.s32.totalorder %s156, %s159
    %p168 = scmp.eq.s32.totalorder %s18, 3
    %p169 = por %p167, %p168
    %p170 = scmp.ne.s32.totalorder %s159, %s160
    %p171 = scmp.eq.s32.totalorder %s18, 0
    %p172 = por %p170, %p171
    %p173 = scmp.ne.s32.totalorder %s159, %s160
    %p174 = scmp.eq.s32.totalorder %s19, 3
    %p175 = por %p173, %p174
    %p177 = scmp.ne.s32.totalorder %s160, %s176
    %p178 = scmp.eq.s32.totalorder %s19, 0
    %p179 = por %p177, %p178
    %s180 = ssub.s32 %s20, %s32
    %s181 = ssub.s32 %s21, %s28
    %s182 = sor.u32 %s180, %s181
    %p183 = scmp.eq.s32.totalorder %s182, 0
    %s185 = sadd.s32 %s184, 1
    %s186 = scalar_select %p183, %s184, %s185
    %p189 = pneg %p183
    %p190 = scmp.eq.s32.totalorder %s13, 3
    %p191 = por %p189, %p190
    %p192 = scmp.ne.s32.totalorder %s184, %s187
    %p193 = scmp.eq.s32.totalorder %s13, 0
    %p194 = por %p192, %p193
    %p195 = scmp.ne.s32.totalorder %s184, %s187
    %p196 = scmp.eq.s32.totalorder %s18, 3
    %p197 = por %p195, %p196
    %p198 = scmp.ne.s32.totalorder %s187, %s188
    %p199 = scmp.eq.s32.totalorder %s18, 0
    %p200 = por %p198, %p199
    %p201 = scmp.ne.s32.totalorder %s187, %s188
    %p202 = scmp.eq.s32.totalorder %s19, 3
    %p203 = por %p201, %p202
    %p205 = scmp.ne.s32.totalorder %s188, %s204
    %p206 = scmp.eq.s32.totalorder %s19, 0
    %p207 = por %p205, %p206
    %p208 = scmp.le.s32.totalorder 1, %s13
    %p209 = scmp.lt.s32.totalorder %s13, 5
    %p210 = pnand %p208, %p209
    %p211 = pneg %p210
    // Predicated region
    $region9: #{tpu_custom_call.1} parent=5 // pred_check
      _
    $region10: #{tpu_custom_call.1} parent=5 // pred_check_branch
      %213 = sbr.rel (%p210) target = $region12
    $region11: #{tpu_custom_call.1} parent=5 // pred_region
      %s214 = ssub.s32 %s13, 1
      // Predicated region
      $region13: #{tpu_custom_call.1} parent=11 // pred_check
        %p215 = pneg %p74
      $region14: #{tpu_custom_call.1} parent=11 // pred_check_branch
        %217 = sbr.rel (%p215) target = $region16
      $region15: #{tpu_custom_call.1} parent=11 // pred_region
        _
      $region16: #{tpu_custom_call.1} parent=11 // pred_fallthru
        _
      // Predicated region
      $region17: #{tpu_custom_call.1} parent=11 // pred_check
        %p218 = pneg %p95
      $region18: #{tpu_custom_call.1} parent=11 // pred_check_branch
        %220 = sbr.rel (%p218) target = $region20
      $region19: #{tpu_custom_call.1} parent=11 // pred_region
        _
      $region20: #{tpu_custom_call.1} parent=11 // pred_fallthru
        _
      // Predicated region
      $region21: #{tpu_custom_call.1} parent=11 // pred_check
        %p221 = pneg %p116
      $region22: #{tpu_custom_call.1} parent=11 // pred_check_branch
        %223 = sbr.rel (%p221) target = $region24
      $region23: #{tpu_custom_call.1} parent=11 // pred_region
        _
      $region24: #{tpu_custom_call.1} parent=11 // pred_fallthru
        _
    $region12: #{tpu_custom_call.1} parent=5 // pred_fallthru
      _
    %p224 = scmp.lt.s32.totalorder %s13, 4
    // Predicated region
    $region25: #{tpu_custom_call.1} parent=5 // pred_check
      %p225 = pneg %p224
    $region26: #{tpu_custom_call.1} parent=5 // pred_check_branch
      %227 = sbr.rel (%p225) target = $region28
    $region27: #{tpu_custom_call.1} parent=5 // pred_region
      // Predicated region
      $region29: #{tpu_custom_call.1} parent=27 // pred_check
        %p228 = pneg %p47
      $region30: #{tpu_custom_call.1} parent=27 // pred_check_branch
        %230 = sbr.rel (%p228) target = $region32
      $region31: #{tpu_custom_call.1} parent=27 // pred_region
        %s231 = smul.u32 2, %s21
        %p232 = scmp.lt.s32.totalorder %s20, 1
        %s233 = scalar_select %p232, %s20, 1
        %p234 = scmp.lt.s32.totalorder %s231, 3
        %s235 = scalar_select %p234, %s231, 3
        %s236 = smul.addr %s233, 4
        %s237 = sadd.s32 %s235, %s236
        %s238 = smul.addr %s237, 8
        %s239 = scalar_lea.vmem %s0, %s238
        %s240 = smul.u32 2, %s21
      $region32: #{tpu_custom_call.1} parent=27 // pred_fallthru
        _
    $region28: #{tpu_custom_call.1} parent=5 // pred_fallthru
      _
    %p241 = scmp.le.s32.totalorder 1, %s13
    %p242 = scmp.lt.s32.totalorder %s13, 5
    %p243 = pnand %p241, %p242
    %p244 = pneg %p243
    // Predicated region
    $region33: #{tpu_custom_call.1} parent=5 // pred_check
      _
    $region34: #{tpu_custom_call.1} parent=5 // pred_check_branch
      %246 = sbr.rel (%p243) target = $region36
    $region35: #{tpu_custom_call.1} parent=5 // pred_region
      %s247 = ssub.s32 %s13, 1
      %s248 = smul.u32 2, %s23
      %p249 = scmp.lt.s32.totalorder %s22, 1
      %s250 = scalar_select %p249, %s22, 1
      %p251 = scmp.lt.s32.totalorder %s248, 3
      %s252 = scalar_select %p251, %s248, 3
      %s253 = smul.addr %s250, 4
      %s254 = sadd.s32 %s252, %s253
      %s255 = smul.addr %s254, 8
      %s256 = scalar_lea.vmem %s0, %s255
      %p257 = pneg %p53
      %p258 = pneg %p50
      %p259 = pneg %p74
      %p260 = pneg %p71
      %p261 = pneg %p95
      %p262 = pneg %p92
      %p263 = pneg %p116
      %p264 = pneg %p113
      %p265 = pneg %p144
      %p266 = pneg %p141
      %s267 = smul.u32 2, %s23
      %p268 = scmp.lt.s32.totalorder %s22, 1
      %s269 = scalar_select %p268, %s22, 1
      %p270 = scmp.lt.s32.totalorder %s267, 3
      %s271 = scalar_select %p270, %s267, 3
      %s272 = smul.addr %s269, 4
      %s273 = sadd.s32 %s271, %s272
      %s274 = smul.addr %s273, 4
      %s275 = scalar_lea.vmem %s4, %s274
      %p276 = pneg %p172
      %p277 = pneg %p169
      %s278 = smul.u32 2, %s23
      %p279 = scmp.lt.s32.totalorder %s22, 1
      %s280 = scalar_select %p279, %s22, 1
      %p281 = scmp.lt.s32.totalorder %s278, 3
      %s282 = scalar_select %p281, %s278, 3
      %s283 = smul.addr %s280, 4
      %s284 = sadd.s32 %s282, %s283
      %s285 = smul.addr %s284, 4
      %s286 = scalar_lea.vmem %s5, %s285
      %p287 = pneg %p200
      %p288 = pneg %p197
      %s289 = smul.u32 2, %s23
      %p290 = scmp.lt.s32.totalorder %s22, 1
      %s291 = scalar_select %p290, %s22, 1
      %p292 = scmp.lt.s32.totalorder %s289, 3
      %s293 = scalar_select %p292, %s289, 3
      %s294 = smul.addr %s291, 4
      %s295 = sadd.s32 %s293, %s294
      %s296 = smul.addr %s295, 4
      %s297 = scalar_lea.vmem %s6, %s296
      %s298 = smul.u32 2, %s23
      %p299 = scmp.lt.s32.totalorder %s22, 1
      %s300 = scalar_select %p299, %s22, 1
      %p301 = scmp.lt.s32.totalorder %s298, 3
      %s302 = scalar_select %p301, %s298, 3
      %s303 = smul.addr %s300, 4
      %s304 = sadd.s32 %s302, %s303
      %s305 = smul.addr %s304, 8
      %s306 = scalar_lea.vmem %s0, %s305
      %s307 = smul.u32 2, %s23
      %s308 = smul.u32 2, %s23
      %p309 = scmp.lt.s32.totalorder %s22, 1
      %s310 = scalar_select %p309, %s22, 1
      %p311 = scmp.lt.s32.totalorder %s308, 3
      %s312 = scalar_select %p311, %s308, 3
      %s313 = smul.addr %s310, 4
      %s314 = sadd.s32 %s312, %s313
      %s315 = smul.addr %s314, 4
      %s316 = scalar_lea.vmem %s4, %s315
      %s317 = smul.u32 2, %s23
      %s318 = smul.u32 2, %s23
      %p319 = scmp.lt.s32.totalorder %s22, 1
      %s320 = scalar_select %p319, %s22, 1
      %p321 = scmp.lt.s32.totalorder %s318, 3
      %s322 = scalar_select %p321, %s318, 3
      %s323 = smul.addr %s320, 4
      %s324 = sadd.s32 %s322, %s323
      %s325 = smul.addr %s324, 4
      %s326 = scalar_lea.vmem %s5, %s325
      %s327 = smul.u32 2, %s23
      %s328 = smul.u32 2, %s23
      %p329 = scmp.lt.s32.totalorder %s22, 1
      %s330 = scalar_select %p329, %s22, 1
      %p331 = scmp.lt.s32.totalorder %s328, 3
      %s332 = scalar_select %p331, %s328, 3
      %s333 = smul.addr %s330, 4
      %s334 = sadd.s32 %s332, %s333
      %s335 = smul.addr %s334, 4
      %s336 = scalar_lea.vmem %s6, %s335
      %s337 = smul.u32 2, %s23
      %v339 = vld [vmem:[%s306] sm:$0xff]
      %v340 = vld [vmem:[%s306 + $0x8] sm:$0xff]
      %v341 = vpack.c.bf16 %v340, %v339
      %v342 = vld [vmem:[%s1] sm:$0xf]
      %v343 = vld [vmem:[%s1 + $0x4] sm:$0xf]
      %v344 = vld [vmem:[%s1 + $0x8] sm:$0xf]
      %v345 = vld [vmem:[%s1 + $0xc] sm:$0xf]
      %v346 = vld [vmem:[%s1 + $0x10] sm:$0xf]
      %v347 = vld [vmem:[%s1 + $0x14] sm:$0xf]
      %v348 = vld [vmem:[%s1 + $0x18] sm:$0xf]
      %v349 = vld [vmem:[%s1 + $0x1c] sm:$0xf]
      %v358 = vunpack.c.l.b16 %v342
      %v359 = vunpack.c.l.b16 %v343
      %v360 = vunpack.c.l.b16 %v344
      %v361 = vunpack.c.l.b16 %v345
      %v362 = vunpack.c.l.b16 %v346
      %v363 = vunpack.c.l.b16 %v347
      %v364 = vunpack.c.l.b16 %v348
      %v365 = vunpack.c.l.b16 %v349
      %v366 = vpack.c.b16 %v359, %v358
      %v367 = vpack.c.b16 %v361, %v360
      %v368 = vpack.c.b16 %v363, %v362
      %v369 = vpack.c.b16 %v365, %v364
      %vm374 = vcmask 523264
      %v376 = vsel %vm374, %v341, 0
      %378 = vmatpush.bf16.msra.mxu0 0
      %379 = vmatpush.bf16.msra.mxu0 0
      %380 = vmatpush.bf16.msra.mxu0 0
      %381 = vmatpush.bf16.msra.mxu0 0
      %382 = vmatpush.bf16.msra.mxu0 %v369
      %383 = vmatpush.bf16.msra.mxu0 %v368
      %384 = vmatpush.bf16.msra.mxu0 %v367
      %385 = vmatpush.bf16.msra.mxu0 %v366
      %386 = vmatmul.bf16.gmra.mxu0 %v376
      %v387 = vpop.f32.mrf.mxu0
      %v388 = vadd.f32 0.0, %v387
      %v389 = vpop.f32.mrf.mxu0
      %v390 = vadd.f32 0.0, %v389
      %391 = vdwg.mxu0
      %v392 = vpack.c.bf16 %v388, %v388
      %v393 = vpack.c.bf16 %v390, %v390
      %vm394 = vcmask 125952
      %395 = vst.msk [vmem:[%s316] sm:$0xf] %vm394, %v392
      %396 = vst.msk [vmem:[%s316 + $0x4] sm:$0xf] %vm394, %v393
      %v397 = vld [vmem:[%s2] sm:$0xf]
      %v398 = vld [vmem:[%s2 + $0x4] sm:$0xf]
      %v399 = vld [vmem:[%s2 + $0x8] sm:$0xf]
      %v400 = vld [vmem:[%s2 + $0xc] sm:$0xf]
      %v401 = vld [vmem:[%s2 + $0x10] sm:$0xf]
      %v402 = vld [vmem:[%s2 + $0x14] sm:$0xf]
      %v403 = vld [vmem:[%s2 + $0x18] sm:$0xf]
      %v404 = vld [vmem:[%s2 + $0x1c] sm:$0xf]
      %v413 = vunpack.c.l.b16 %v397
      %v414 = vunpack.c.l.b16 %v398
      %v415 = vunpack.c.l.b16 %v399
      %v416 = vunpack.c.l.b16 %v400
      %v417 = vunpack.c.l.b16 %v401
      %v418 = vunpack.c.l.b16 %v402
      %v419 = vunpack.c.l.b16 %v403
      %v420 = vunpack.c.l.b16 %v404
      %v421 = vpack.c.b16 %v414, %v413
      %v422 = vpack.c.b16 %v416, %v415
      %v423 = vpack.c.b16 %v418, %v417
      %v424 = vpack.c.b16 %v420, %v419
      %429 = vmatpush.bf16.msra.mxu0 0
      %430 = vmatpush.bf16.msra.mxu0 0
      %431 = vmatpush.bf16.msra.mxu0 0
      %432 = vmatpush.bf16.msra.mxu0 0
      %433 = vmatpush.bf16.msra.mxu0 %v424
      %434 = vmatpush.bf16.msra.mxu0 %v423
      %435 = vmatpush.bf16.msra.mxu0 %v422
      %436 = vmatpush.bf16.msra.mxu0 %v421
      %437 = vmatmul.bf16.gmra.mxu0 %v376
      %v438 = vpop.f32.mrf.mxu0
      %v439 = vadd.f32 0.0, %v438
      %v440 = vpop.f32.mrf.mxu0
      %v441 = vadd.f32 0.0, %v440
      %442 = vdwg.mxu0
      %v443 = vpack.c.bf16 %v439, %v439
      %v444 = vpack.c.bf16 %v441, %v441
      %445 = vst.msk [vmem:[%s326] sm:$0xf] %vm394, %v443
      %446 = vst.msk [vmem:[%s326 + $0x4] sm:$0xf] %vm394, %v444
      %v447 = vld [vmem:[%s3] sm:$0xf]
      %v448 = vld [vmem:[%s3 + $0x4] sm:$0xf]
      %v449 = vld [vmem:[%s3 + $0x8] sm:$0xf]
      %v450 = vld [vmem:[%s3 + $0xc] sm:$0xf]
      %v451 = vld [vmem:[%s3 + $0x10] sm:$0xf]
      %v452 = vld [vmem:[%s3 + $0x14] sm:$0xf]
      %v453 = vld [vmem:[%s3 + $0x18] sm:$0xf]
      %v454 = vld [vmem:[%s3 + $0x1c] sm:$0xf]
      %v463 = vunpack.c.l.b16 %v447
      %v464 = vunpack.c.l.b16 %v448
      %v465 = vunpack.c.l.b16 %v449
      %v466 = vunpack.c.l.b16 %v450
      %v467 = vunpack.c.l.b16 %v451
      %v468 = vunpack.c.l.b16 %v452
      %v469 = vunpack.c.l.b16 %v453
      %v470 = vunpack.c.l.b16 %v454
      %v471 = vpack.c.b16 %v464, %v463
      %v472 = vpack.c.b16 %v466, %v465
      %v473 = vpack.c.b16 %v468, %v467
      %v474 = vpack.c.b16 %v470, %v469
      %479 = vmatpush.bf16.msra.mxu0 0
      %480 = vmatpush.bf16.msra.mxu0 0
      %481 = vmatpush.bf16.msra.mxu0 0
      %482 = vmatpush.bf16.msra.mxu0 0
      %483 = vmatpush.bf16.msra.mxu0 %v474
      %484 = vmatpush.bf16.msra.mxu0 %v473
      %485 = vmatpush.bf16.msra.mxu0 %v472
      %486 = vmatpush.bf16.msra.mxu0 %v471
      %487 = vmatmul.bf16.gmra.mxu0 %v376
      %v488 = vpop.f32.mrf.mxu0
      %v489 = vadd.f32 0.0, %v488
      %v490 = vpop.f32.mrf.mxu0
      %v491 = vadd.f32 0.0, %v490
      %492 = vdwg.mxu0
      %v493 = vpack.c.bf16 %v489, %v489
      %v494 = vpack.c.bf16 %v491, %v491
      %495 = vst.msk [vmem:[%s336] sm:$0xf] %vm394, %v493
      %496 = vst.msk [vmem:[%s336 + $0x4] sm:$0xf] %vm394, %v494
      %s497 = smul.u32 2, %s23
      %p498 = scmp.lt.s32.totalorder %s22, 1
      %s499 = scalar_select %p498, %s22, 1
      %p500 = scmp.lt.s32.totalorder %s497, 3
      %s501 = scalar_select %p500, %s497, 3
      %s502 = smul.addr %s499, 4
      %s503 = sadd.s32 %s501, %s502
      %s504 = smul.addr %s503, 4
      %s505 = scalar_lea.vmem %s4, %s504
      %s506 = smul.u32 2, %s23
      %p507 = scmp.lt.s32.totalorder %s22, 1
      %s508 = scalar_select %p507, %s22, 1
      %p509 = scmp.lt.s32.totalorder %s506, 3
      %s510 = scalar_select %p509, %s506, 3
      %s511 = smul.addr %s508, 4
      %s512 = sadd.s32 %s510, %s511
      %s513 = smul.addr %s512, 4
      %s514 = scalar_lea.vmem %s5, %s513
      %s515 = smul.u32 2, %s23
      %p516 = scmp.lt.s32.totalorder %s22, 1
      %s517 = scalar_select %p516, %s22, 1
      %p518 = scmp.lt.s32.totalorder %s515, 3
      %s519 = scalar_select %p518, %s515, 3
      %s520 = smul.addr %s517, 4
      %s521 = sadd.s32 %s519, %s520
      %s522 = smul.addr %s521, 4
      %s523 = scalar_lea.vmem %s6, %s522
      // Predicated region
      $region37: #{tpu_custom_call.1} parent=35 // pred_check
        %p524 = pneg %p141
      $region38: #{tpu_custom_call.1} parent=35 // pred_check_branch
        %526 = sbr.rel (%p524) target = $region40
      $region39: #{tpu_custom_call.1} parent=35 // pred_region
        %s527 = smul.u32 2, %s23
      $region40: #{tpu_custom_call.1} parent=35 // pred_fallthru
        _
      // Predicated region
      $region41: #{tpu_custom_call.1} parent=35 // pred_check
        %p528 = pneg %p169
      $region42: #{tpu_custom_call.1} parent=35 // pred_check_branch
        %530 = sbr.rel (%p528) target = $region44
      $region43: #{tpu_custom_call.1} parent=35 // pred_region
        %s531 = smul.u32 2, %s23
      $region44: #{tpu_custom_call.1} parent=35 // pred_fallthru
        _
      // Predicated region
      $region45: #{tpu_custom_call.1} parent=35 // pred_check
        %p532 = pneg %p197
      $region46: #{tpu_custom_call.1} parent=35 // pred_check_branch
        %534 = sbr.rel (%p532) target = $region48
      $region47: #{tpu_custom_call.1} parent=35 // pred_region
        %s535 = smul.u32 2, %s23
      $region48: #{tpu_custom_call.1} parent=35 // pred_fallthru
        _
    $region36: #{tpu_custom_call.1} parent=5 // pred_fallthru
      _
    %p536 = scmp.le.s32.totalorder 2, %s13
    // Predicated region
    $region49: #{tpu_custom_call.1} parent=5 // pred_check
      %p537 = pneg %p536
    $region50: #{tpu_custom_call.1} parent=5 // pred_check_branch
      %539 = sbr.rel (%p537) target = $region52
    $region51: #{tpu_custom_call.1} parent=5 // pred_region
      %s540 = ssub.s32 %s13, 2
      // Predicated region
      $region53: #{tpu_custom_call.1} parent=51 // pred_check
        %p541 = pneg %p147
      $region54: #{tpu_custom_call.1} parent=51 // pred_check_branch
        %543 = sbr.rel (%p541) target = $region56
      $region55: #{tpu_custom_call.1} parent=51 // pred_region
        %s544 = smul.u32 2, %s25
        %p545 = scmp.lt.s32.totalorder %s24, 1
        %s546 = scalar_select %p545, %s24, 1
        %p547 = scmp.lt.s32.totalorder %s544, 3
        %s548 = scalar_select %p547, %s544, 3
        %s549 = smul.addr %s546, 4
        %s550 = sadd.s32 %s548, %s549
        %s551 = smul.addr %s550, 4
        %s552 = scalar_lea.vmem %s4, %s551
      $region56: #{tpu_custom_call.1} parent=51 // pred_fallthru
        _
      // Predicated region
      $region57: #{tpu_custom_call.1} parent=51 // pred_check
        %p553 = pneg %p175
      $region58: #{tpu_custom_call.1} parent=51 // pred_check_branch
        %555 = sbr.rel (%p553) target = $region60
      $region59: #{tpu_custom_call.1} parent=51 // pred_region
        %s556 = smul.u32 2, %s25
        %p557 = scmp.lt.s32.totalorder %s24, 1
        %s558 = scalar_select %p557, %s24, 1
        %p559 = scmp.lt.s32.totalorder %s556, 3
        %s560 = scalar_select %p559, %s556, 3
        %s561 = smul.addr %s558, 4
        %s562 = sadd.s32 %s560, %s561
        %s563 = smul.addr %s562, 4
        %s564 = scalar_lea.vmem %s5, %s563
      $region60: #{tpu_custom_call.1} parent=51 // pred_fallthru
        _
      // Predicated region
      $region61: #{tpu_custom_call.1} parent=51 // pred_check
        %p565 = pneg %p203
      $region62: #{tpu_custom_call.1} parent=51 // pred_check_branch
        %567 = sbr.rel (%p565) target = $region64
      $region63: #{tpu_custom_call.1} parent=51 // pred_region
        %s568 = smul.u32 2, %s25
        %p569 = scmp.lt.s32.totalorder %s24, 1
        %s570 = scalar_select %p569, %s24, 1
        %p571 = scmp.lt.s32.totalorder %s568, 3
        %s572 = scalar_select %p571, %s568, 3
        %s573 = smul.addr %s570, 4
        %s574 = sadd.s32 %s572, %s573
        %s575 = smul.addr %s574, 4
        %s576 = scalar_lea.vmem %s6, %s575
      $region64: #{tpu_custom_call.1} parent=51 // pred_fallthru
        _
    $region52: #{tpu_custom_call.1} parent=5 // pred_fallthru
      _
  $region6: #{tpu_custom_call.1} parent=0 // loop_footer
    %s17 = sadd.s32 1, %s13
  $region7: #{tpu_custom_call.1} parent=0 // loop_footer_branch
    %12 = sbr.rel target = $region3
  $region8: #{tpu_custom_call.1} parent=0 // loop_exit
    _

</llo_original>
